<compile_context>
chip_gen: v5e
topology: v5e:2x2
jax: 0.10.0
libtpu: 0.0.40
codegen_flags: <defaults>
</compile_context>

<pallas_src>
import functools

import jax
import jax.numpy as jnp
import numpy as np
from jax.experimental import pallas as pl
from jax.experimental.pallas import tpu as pltpu

ALPHA = 0.5   # fixed by DiceLoss
GAMMA = 1     # DiceLoss default gamma
SMOOTH = 1.0
_LANE = 128
_SUBLANE = 8


def _logcosh_dice_kernel(pred_ref, tgt_ref, out_ref, *, s_blk, s_out, hw, needs_mask):
    # pred_ref: (C, s_blk, 128) logits (native dtype), tgt_ref: (s_blk, 128) int labels,
    # out_ref:  (s_out, 128) f32 per-block partial sums of the per-pixel loss.
    logits = pred_ref[...].astype(jnp.float32)      # cast in VMEM (no-op for f32)
    labels = tgt_ref[...].astype(jnp.int32)

    # Softmax probability of the label channel. All channel reductions run over
    # the leading axis -> elementwise across full (S,128) vregs (pure VPU).
    # NOTE: for very large C a two-pass fori_loop over channels would avoid
    # materializing the (C,S,128) temporaries; not needed at small/medium C.
    m = jnp.max(logits, axis=0, keepdims=True)      # (1, S, 128)
    e = jnp.exp(logits - m)                         # (C, S, 128)
    denom = jnp.sum(e, axis=0)                      # (S, 128)
    ch = jax.lax.broadcasted_iota(jnp.int32, logits.shape, 0)
    hit = ch == labels[None, :, :]
    num = jnp.sum(jnp.where(hit, e, 0.0), axis=0)   # exp(logit_label - m)
    tp = num / denom                                # p_label

    # alpha=0.5, smooth=1, gamma=1  =>  per-pixel Dice term x = (1 - tp) / 2 in [0, 0.5].
    x = 0.5 * (1.0 - tp)
    # log(cosh(x)) as an even Taylor polynomial in u = x^2 (|err| < 2e-7 on [0,0.5]);
    # pure VPU FMAs, no EUP pushes.
    u = x * x
    loss = u * (0.5 + u * (-1.0 / 12.0 + u * (1.0 / 45.0
                + u * (-17.0 / 2520.0 + u * (31.0 / 14175.0)))))

    def fold(v):
        if s_blk == s_out:
            return v
        # s_out == 8 divides s_blk: fold sublane groups with a tile-aligned reshape
        # + leading-axis adds (VPU); keeps the output small and lane-dense.
        return v.reshape(s_blk // s_out, s_out, _LANE).sum(axis=0)

    if needs_mask:
        last = pl.num_programs(1) - 1

        @pl.when(pl.program_id(1) != last)
        def _():
            out_ref[...] = fold(loss)

        @pl.when(pl.program_id(1) == last)
        def _():
            # Only the last pixel block contains padded / DMA-clamped pixels;
            # zero them with a true select (safe even if they produced NaN/Inf).
            sub = jax.lax.broadcasted_iota(jnp.int32, (s_blk, _LANE), 0)
            lane = jax.lax.broadcasted_iota(jnp.int32, (s_blk, _LANE), 1)
            pix = (pl.program_id(1) * s_blk + sub) * _LANE + lane
            out_ref[...] = fold(jnp.where(pix < hw, loss, 0.0))
    else:
        out_ref[...] = fold(loss)


def log_cosh_dice_loss(prediction, target, *, vmem_budget_bytes=20 << 20,
                       max_s_blk=1024):
    """prediction: (N, C, *spatial) float logits; target: (N, 1, *spatial) int labels."""
    N, C = prediction.shape[0], prediction.shape[1]
    HW = int(np.prod(prediction.shape[2:]))
    P = N * HW

    # Free reshapes only (no transpose, no dtype cast): channels stay ahead of the
    # flattened per-batch pixel axis; all casts happen inside the kernel.
    pred = prediction.reshape(N, C, HW)
    tgt = target.reshape(N, HW)

    if HW % _LANE:
        # TODO(synk): rare fallback (HW not a multiple of 128) costs one extra HBM
        # pass; a masked edge-block path would avoid it. All aligned shapes skip it.
        pad = _LANE - HW % _LANE
        pred = jnp.pad(pred, ((0, 0), (0, 0), (0, pad)))
        tgt = jnp.pad(tgt, ((0, 0), (0, pad)))
    S_total = pred.shape[-1] // _LANE

    def _cdiv(a, b):
        return -(-a // b)

    # Sublane packing multiple required by the narrowest streamed dtype
    # (8 rows for 32-bit, 16 for bf16/f16, 32 for int8).
    def _sub_mult(dt):
        return max(_SUBLANE, 32 // max(1, jnp.dtype(dt).itemsize))
    sub_mult = max(_sub_mult(pred.dtype), _sub_mult(tgt.dtype))

    # Adaptive tile: biggest block whose double-buffered inputs plus the in-kernel
    # f32 working set (~4 f32 values per channel per pixel) fit the VMEM budget,
    # capped at max_s_blk sublane rows.
    pb = jnp.dtype(pred.dtype).itemsize
    tb = jnp.dtype(tgt.dtype).itemsize
    per_row = _LANE * (2 * (C * pb + tb) + 16 * C + 64)
    s_cap = min(max_s_blk, max(sub_mult, int(vmem_budget_bytes // per_row)))
    if S_total <= s_cap:
        s_blk = S_total
    else:
        s_blk = max(sub_mult, (s_cap // sub_mult) * sub_mult)
    num_j = _cdiv(S_total, s_blk)

    # Keep >= ~8 grid steps (v7x megacore sharding + full double-buffer pipeline)
    # as long as each step still moves enough data to amortize step overhead.
    if N * num_j < 8:
        s_alt = _cdiv(_cdiv(S_total, _cdiv(8, N)), sub_mult) * sub_mult
        if 256 <= s_alt < s_blk:
            s_blk = s_alt
            num_j = _cdiv(S_total, s_blk)

    s_out = _SUBLANE if s_blk % _SUBLANE == 0 else s_blk
    needs_mask = (num_j * s_blk * _LANE) != HW

    pred4 = pred.reshape(N, C, S_total, _LANE)
    tgt3 = tgt.reshape(N, S_total, _LANE)

    kernel = functools.partial(_logcosh_dice_kernel, s_blk=s_blk, s_out=s_out,
                               hw=HW, needs_mask=needs_mask)

    partials = pl.pallas_call(
        kernel,
        out_shape=jax.ShapeDtypeStruct((N, num_j, s_out, _LANE), jnp.float32),
        grid=(N, num_j),
        in_specs=[
            pl.BlockSpec((pl.Squeezed(), C, s_blk, _LANE), lambda n, j: (n, 0, j, 0)),
            pl.BlockSpec((pl.Squeezed(), s_blk, _LANE), lambda n, j: (n, j, 0)),
        ],
        out_specs=pl.BlockSpec((pl.Squeezed(), pl.Squeezed(), s_out, _LANE),
                               lambda n, j: (n, j, 0, 0)),
        compiler_params=pltpu.CompilerParams(
            dimension_semantics=("parallel", "parallel"),
            vmem_limit_bytes=32 * 1024 * 1024),
    )(pred4, tgt3)

    # Final reduction / mean over all pixels in the wrapper (tiny data).
    return jnp.sum(partials) / P


def _reference_logcosh(prediction, target):
    # Faithful translation of LogCoshLoss -> DiceLoss -> FocalTverskyLoss forward.
    N, C, H, W = prediction.shape
    preds = jax.nn.softmax(prediction.astype(jnp.float32), axis=1)
    labels = target.reshape(N, H, W)
    y = jax.nn.one_hot(labels, C, dtype=jnp.float32)          # (N, H, W, C)
    y = jnp.transpose(y, (0, 3, 1, 2))                        # (N, C, H, W)
    tp = (y * preds).sum(axis=1)
    fn = (y * (1.0 - preds)).sum(axis=1)
    fp = ((1.0 - y) * preds).sum(axis=1)
    tversky = (tp + SMOOTH) / (tp + ALPHA * fn + (1.0 - ALPHA) * fp + SMOOTH)
    per_pixel = (1.0 - tversky) ** GAMMA                      # reduce=False
    return jnp.log(jnp.cosh(per_pixel)).mean()


if __name__ == "__main__":
    key = jax.random.PRNGKey(0)
    k_pred, k_tgt = jax.random.split(key)

    N, C, H, W = 2, 4, 16, 16
    prediction = jax.random.normal(k_pred, (N, C, H, W), dtype=jnp.float32)
    target = jax.random.randint(k_tgt, (N, 1, H, W), 0, C, dtype=jnp.int32)

    loss = jax.block_until_ready(log_cosh_dice_loss(prediction, target))
    ref = jax.block_until_ready(_reference_logcosh(prediction, target))

    np.testing.assert_allclose(np.asarray(loss), np.asarray(ref), rtol=1e-5, atol=3e-6)
    print("KERNEL_OK")
</pallas_src>

<mosaic_0001>
module attributes {stable_mosaic.version = 11 : i64} {
  func.func @_logcosh_dice_kernel(%arg0: i32, %arg1: i32, %arg2: memref<1x4x2x128xf32, #tpu.memory_space<vmem>>, %arg3: memref<1x2x128xi32, #tpu.memory_space<vmem>>, %arg4: memref<1x1x2x128xf32, #tpu.memory_space<vmem>>) attributes {dimension_semantics = [#tpu.dimension_semantics<parallel>, #tpu.dimension_semantics<parallel>], iteration_bounds = array<i64: 2, 1>, scalar_prefetch = 0 : i64, scratch_operands = 0 : i64, tpu.core_type = #tpu.core_type<tc>, window_params = [{transform_indices = @transform_0, window_bounds = array<i64: 1, 4, 2, 128>}, {transform_indices = @transform_1, window_bounds = array<i64: 1, 2, 128>}, {transform_indices = @transform_2, window_bounds = array<i64: 1, 1, 2, 128>}]} {
    %c0 = arith.constant 0 : index
    %c0_0 = arith.constant 0 : index
    %c0_1 = arith.constant 0 : index
    %c0_2 = arith.constant 0 : index
    %0 = vector.load %arg2[%c0, %c0_0, %c0_1, %c0_2] : memref<1x4x2x128xf32, #tpu.memory_space<vmem>>, vector<1x4x2x128xf32>
    %1 = vector.shape_cast %0 : vector<1x4x2x128xf32> to vector<4x2x128xf32>
    %c0_3 = arith.constant 0 : index
    %c0_4 = arith.constant 0 : index
    %c0_5 = arith.constant 0 : index
    %2 = vector.load %arg3[%c0_3, %c0_4, %c0_5] : memref<1x2x128xi32, #tpu.memory_space<vmem>>, vector<1x2x128xi32>
    %3 = vector.shape_cast %2 : vector<1x2x128xi32> to vector<2x128xi32>
    %cst = arith.constant dense<0xFF800000> : vector<2x128xf32>
    %4 = vector.multi_reduction <maximumf>, %1, %cst [0] : vector<4x2x128xf32> to vector<2x128xf32>
    %5 = vector.shape_cast %4 : vector<2x128xf32> to vector<1x2x128xf32>
    %6 = vector.broadcast %5 : vector<1x2x128xf32> to vector<4x2x128xf32>
    %7 = arith.subf %1, %6 : vector<4x2x128xf32>
    %8 = math.exp %7 : vector<4x2x128xf32>
    %cst_6 = arith.constant dense<0.000000e+00> : vector<2x128xf32>
    %9 = vector.multi_reduction <add>, %8, %cst_6 [0] : vector<4x2x128xf32> to vector<2x128xf32>
    %10 = tpu.iota {dimensions = array<i32: 0>} : vector<4x2x128xi32>
    %11 = vector.shape_cast %3 : vector<2x128xi32> to vector<1x2x128xi32>
    %12 = vector.broadcast %11 : vector<1x2x128xi32> to vector<4x2x128xi32>
    %13 = arith.cmpi eq, %10, %12 : vector<4x2x128xi32>
    %cst_7 = arith.constant 0.000000e+00 : f32
    %14 = vector.broadcast %cst_7 : f32 to vector<4x2x128xf32>
    %15 = arith.select %13, %8, %14 : vector<4x2x128xi1>, vector<4x2x128xf32>
    %cst_8 = arith.constant dense<0.000000e+00> : vector<2x128xf32>
    %16 = vector.multi_reduction <add>, %15, %cst_8 [0] : vector<4x2x128xf32> to vector<2x128xf32>
    %17 = arith.divf %16, %9 : vector<2x128xf32>
    %cst_9 = arith.constant 1.000000e+00 : f32
    %18 = vector.broadcast %cst_9 : f32 to vector<2x128xf32>
    %19 = arith.subf %18, %17 : vector<2x128xf32>
    %cst_10 = arith.constant 5.000000e-01 : f32
    %20 = vector.broadcast %cst_10 : f32 to vector<2x128xf32>
    %21 = arith.mulf %20, %19 : vector<2x128xf32>
    %22 = arith.mulf %21, %21 : vector<2x128xf32>
    %cst_11 = arith.constant 0.0021869489 : f32
    %23 = vector.broadcast %cst_11 : f32 to vector<2x128xf32>
    %24 = arith.mulf %22, %23 : vector<2x128xf32>
    %cst_12 = arith.constant -0.00674603181 : f32
    %25 = vector.broadcast %cst_12 : f32 to vector<2x128xf32>
    %26 = arith.addf %25, %24 : vector<2x128xf32>
    %27 = arith.mulf %22, %26 : vector<2x128xf32>
    %cst_13 = arith.constant 0.0222222228 : f32
    %28 = vector.broadcast %cst_13 : f32 to vector<2x128xf32>
    %29 = arith.addf %28, %27 : vector<2x128xf32>
    %30 = arith.mulf %22, %29 : vector<2x128xf32>
    %cst_14 = arith.constant -0.0833333358 : f32
    %31 = vector.broadcast %cst_14 : f32 to vector<2x128xf32>
    %32 = arith.addf %31, %30 : vector<2x128xf32>
    %33 = arith.mulf %22, %32 : vector<2x128xf32>
    %cst_15 = arith.constant 5.000000e-01 : f32
    %34 = vector.broadcast %cst_15 : f32 to vector<2x128xf32>
    %35 = arith.addf %34, %33 : vector<2x128xf32>
    %36 = arith.mulf %22, %35 : vector<2x128xf32>
    %c0_16 = arith.constant 0 : index
    %c0_17 = arith.constant 0 : index
    %c0_18 = arith.constant 0 : index
    %c0_19 = arith.constant 0 : index
    %37 = vector.load %arg4[%c0_16, %c0_17, %c0_18, %c0_19] : memref<1x1x2x128xf32, #tpu.memory_space<vmem>>, vector<1x1x2x128xf32>
    %38 = vector.shape_cast %37 : vector<1x1x2x128xf32> to vector<2x128xf32>
    %39 = vector.shape_cast %36 : vector<2x128xf32> to vector<1x1x2x128xf32>
    tpu.vector_store %arg4[%c0_16, %c0_17, %c0_18, %c0_19], %39 {strides = array<i32>} : memref<1x1x2x128xf32, #tpu.memory_space<vmem>>, vector<1x1x2x128xf32>,
    return
  }
  func.func @transform_0(%arg0: i32, %arg1: i32) -> (i32, i32, i32, i32) {
    %c0_i32 = arith.constant 0 : i32
    %c0_i32_0 = arith.constant 0 : i32
    %c0_i32_1 = arith.constant 0 : i32
    return %arg0, %c0_i32, %arg1, %c0_i32_0 : i32, i32, i32, i32
  }
  func.func @transform_1(%arg0: i32, %arg1: i32) -> (i32, i32, i32) {
    %c0_i32 = arith.constant 0 : i32
    %c0_i32_0 = arith.constant 0 : i32
    return %arg0, %arg1, %c0_i32 : i32, i32, i32
  }
  func.func @transform_2(%arg0: i32, %arg1: i32) -> (i32, i32, i32, i32) {
    %c0_i32 = arith.constant 0 : i32
    %c0_i32_0 = arith.constant 0 : i32
    %c0_i32_1 = arith.constant 0 : i32
    return %arg0, %arg1, %c0_i32, %c0_i32_0 : i32, i32, i32, i32
  }
}

</mosaic_0001>

<llo_original>
// kernel: tpu_custom_call.1
$region0: #{tpu_custom_call.1}
  #allocation0 [shape = 'u32[]', space=smem, size = 0x4, offset = 0x4, fixed_abs, tag = 'smem constant byte address 0x4 - core index']
  #allocation1 [shape = 'u32[72,128]{1,0:T(1,128)}', space=vmem, size = 0x9000, scoped, tag = 'internal scratch']
  %s0 = inlined_call_operand.hbm [shape: f32[2,4,2,128], index: 0, kind: input, shape index: {}]
  %s1 = inlined_call_operand.hbm [shape: s32[2,2,128], index: 1, kind: input, shape index: {}]
  %s2 = inlined_call_operand.hbm [shape: f32[2,1,2,128], index: 2, kind: output, shape index: {}]
  %s3 = sld [smem:[#allocation0]]
  $region49: #{tpu_custom_call.1} parent=0
    _
  %s5 = ssub.s32 1, %s3
  %s6 = scalar_select 0, %s5, %s3
  $region1: #{tpu_custom_call.1} parent=0
    #allocation2 [shape = 'u8[8192]{0}', space=vmem, size = 0x2000, scoped, tag = 'input window, operand 0']
    #allocation3 [shape = 's32[2]{0}', space=sflag, size = 0x8, scoped, tag = 'scoped memory for tpu_custom_call.1']
    #allocation4 [shape = 's32[2]{0}', space=sflag, size = 0x8, scoped, tag = 'scoped memory for tpu_custom_call.1']
    #allocation5 [shape = 'u8[2048]{0}', space=vmem, size = 0x800, scoped, tag = 'input window, operand 1']
    #allocation6 [shape = 's32[2]{0}', space=sflag, size = 0x8, scoped, tag = 'scoped memory for tpu_custom_call.1']
    #allocation7 [shape = 'u8[2048]{0}', space=vmem, size = 0x800, scoped, tag = 'output window, operand 0']
    %7 = vsyncpa [#allocation3], 0
    %s8 = scalar_lea.sflag [#allocation3], 1
    %9 = vsyncpa %s8, 0
    %10 = vsyncpa [#allocation6], 0
    %s11 = scalar_lea.sflag [#allocation6], 1
    %12 = vsyncpa %s11, 0
    %13 = vsyncpa [#allocation4], 0
    %s14 = scalar_lea.sflag [#allocation4], 1
    %15 = vsyncpa %s14, 0
    loop: start=0, step=1, limit=4
    $region2: #{tpu_custom_call.1} parent=1 // loop_pre_header
      _
    $region3: #{tpu_custom_call.1} parent=1 // loop_header
      %s17 = sphi 0, %s21
      %p18 = scmp.ge.s32.totalorder %s17, 4
      %s24 = sphi 0, %s36
      %s25 = sphi 0, %s32
      %s26 = sphi 0, %s24
      %s27 = sphi 0, %s25
      %s28 = sphi 0, %s26
      %s29 = sphi 0, %s27
      %s41 = sphi 0, %s43
      %s44 = sphi 0, %s41
      %s45 = sphi 0, %s44
      %s61 = sphi 0, %s45
      %s69 = sphi 0, %s71
      %s72 = sphi 0, %s69
      %s73 = sphi 0, %s72
      %s89 = sphi 0, %s73
      %s97 = sphi 0, %s99
      %s100 = sphi 0, %s97
      %s101 = sphi 0, %s100
      %s117 = sphi 0, %s101
    $region4: #{tpu_custom_call.1} parent=1 // loop_header_branch
      %20 = sbr.rel (%p18) target = $region8
    $region5: #{tpu_custom_call.1} parent=1 // loop_body
      %s22 = ssub.s32 %s17, 1
      %s23 = ssub.s32 %s17, 2
      %s30 = sadd.s32 1, %s25
      %p31 = scmp.ge.s32.totalorder %s30, 1
      %s32 = scalar_select %p31, 0, %s30
      %s33 = sadd.s32 1, %s24
      %s34 = scalar_select %p31, %s33, %s24
      %p35 = scmp.ge.s32.totalorder %s34, 2
      %s36 = scalar_select %p35, 0, %s34
      %s37 = ssub.s32 %s24, %s36
      %s38 = ssub.s32 %s25, %s32
      %s39 = sor.u32 %s37, %s38
      %p40 = scmp.eq.s32.totalorder %s39, 0
      %s42 = sadd.s32 %s41, 1
      %s43 = scalar_select %p40, %s41, %s42
      %p46 = pneg %p40
      %p47 = scmp.eq.s32.totalorder %s17, 1
      %p48 = por %p46, %p47
      %p49 = scmp.ne.s32.totalorder %s41, %s44
      %p50 = scmp.eq.s32.totalorder %s17, 0
      %p51 = por %p49, %p50
      %p52 = scmp.ne.s32.totalorder %s41, %s44
      %p53 = scmp.eq.s32.totalorder %s22, 1
      %p54 = por %p52, %p53
      %p55 = scmp.ne.s32.totalorder %s44, %s45
      %p56 = scmp.eq.s32.totalorder %s22, 0
      %p57 = por %p55, %p56
      %p58 = scmp.ne.s32.totalorder %s44, %s45
      %p59 = scmp.eq.s32.totalorder %s23, 1
      %p60 = por %p58, %p59
      %p62 = scmp.ne.s32.totalorder %s45, %s61
      %p63 = scmp.eq.s32.totalorder %s23, 0
      %p64 = por %p62, %p63
      %s65 = ssub.s32 %s24, %s36
      %s66 = ssub.s32 %s25, %s32
      %s67 = sor.u32 %s65, %s66
      %p68 = scmp.eq.s32.totalorder %s67, 0
      %s70 = sadd.s32 %s69, 1
      %s71 = scalar_select %p68, %s69, %s70
      %p74 = pneg %p68
      %p75 = scmp.eq.s32.totalorder %s17, 1
      %p76 = por %p74, %p75
      %p77 = scmp.ne.s32.totalorder %s69, %s72
      %p78 = scmp.eq.s32.totalorder %s17, 0
      %p79 = por %p77, %p78
      %p80 = scmp.ne.s32.totalorder %s69, %s72
      %p81 = scmp.eq.s32.totalorder %s22, 1
      %p82 = por %p80, %p81
      %p83 = scmp.ne.s32.totalorder %s72, %s73
      %p84 = scmp.eq.s32.totalorder %s22, 0
      %p85 = por %p83, %p84
      %p86 = scmp.ne.s32.totalorder %s72, %s73
      %p87 = scmp.eq.s32.totalorder %s23, 1
      %p88 = por %p86, %p87
      %p90 = scmp.ne.s32.totalorder %s73, %s89
      %p91 = scmp.eq.s32.totalorder %s23, 0
      %p92 = por %p90, %p91
      %s93 = ssub.s32 %s24, %s36
      %s94 = ssub.s32 %s25, %s32
      %s95 = sor.u32 %s93, %s94
      %p96 = scmp.eq.s32.totalorder %s95, 0
      %s98 = sadd.s32 %s97, 1
      %s99 = scalar_select %p96, %s97, %s98
      %p102 = pneg %p96
      %p103 = scmp.eq.s32.totalorder %s17, 1
      %p104 = por %p102, %p103
      %p105 = scmp.ne.s32.totalorder %s97, %s100
      %p106 = scmp.eq.s32.totalorder %s17, 0
      %p107 = por %p105, %p106
      %p108 = scmp.ne.s32.totalorder %s97, %s100
      %p109 = scmp.eq.s32.totalorder %s22, 1
      %p110 = por %p108, %p109
      %p111 = scmp.ne.s32.totalorder %s100, %s101
      %p112 = scmp.eq.s32.totalorder %s22, 0
      %p113 = por %p111, %p112
      %p114 = scmp.ne.s32.totalorder %s100, %s101
      %p115 = scmp.eq.s32.totalorder %s23, 1
      %p116 = por %p114, %p115
      %p118 = scmp.ne.s32.totalorder %s101, %s117
      %p119 = scmp.eq.s32.totalorder %s23, 0
      %p120 = por %p118, %p119
      %p121 = scmp.le.s32.totalorder 1, %s17
      %p122 = scmp.lt.s32.totalorder %s17, 3
      %p123 = pnand %p121, %p122
      %p124 = pneg %p123
      // Predicated region
      $region9: #{tpu_custom_call.1} parent=5 // pred_check
        _
      $region10: #{tpu_custom_call.1} parent=5 // pred_check_branch
        %126 = sbr.rel (%p123) target = $region12
      $region11: #{tpu_custom_call.1} parent=5 // pred_region
        %s127 = ssub.s32 %s17, 1
      $region12: #{tpu_custom_call.1} parent=5 // pred_fallthru
        _
      %p128 = scmp.lt.s32.totalorder %s17, 2
      // Predicated region
      $region13: #{tpu_custom_call.1} parent=5 // pred_check
        %p129 = pneg %p128
      $region14: #{tpu_custom_call.1} parent=5 // pred_check_branch
        %131 = sbr.rel (%p129) target = $region16
      $region15: #{tpu_custom_call.1} parent=5 // pred_region
        // Predicated region
        $region17: #{tpu_custom_call.1} parent=15 // pred_check
          %p132 = pneg %p51
        $region18: #{tpu_custom_call.1} parent=15 // pred_check_branch
          %134 = sbr.rel (%p132) target = $region20
        $region19: #{tpu_custom_call.1} parent=15 // pred_region
          %s135 = sand.u32 %s41, 1
          %s136 = scalar_lea.sflag [#allocation3], %s135
          %s137 = sand.u32 %s41, 1
          %s138 = smul.addr %s137, 8
          %s139 = scalar_lea.vmem [#allocation2], %s138
          %141 = vsyncadd %s136, 0
          %s142 = smul.addr %s24, 4
          %s143 = sadd.s32 %s25, %s142
          %s144 = smul.addr %s143, 2
          %s145 = scalar_lea.hbm %s0, %s144
          %s146 = sshll.u32 %s145, 4
          %s147 = int_to_ptr.hbm [resolvable:$true] %s146
          %s148 = sshll.u32 %s139, 4
          %s149 = int_to_ptr.vmem [resolvable:$true] %s148
          %154 = dma.hbm_to_vmem [thread:$0]  %s147, 128, %s149, %s136, 32, 32, 2
        $region20: #{tpu_custom_call.1} parent=15 // pred_fallthru
          _
        // Predicated region
        $region21: #{tpu_custom_call.1} parent=15 // pred_check
          %p155 = pneg %p79
        $region22: #{tpu_custom_call.1} parent=15 // pred_check_branch
          %157 = sbr.rel (%p155) target = $region24
        $region23: #{tpu_custom_call.1} parent=15 // pred_region
          %s158 = sand.u32 %s69, 1
          %s159 = scalar_lea.sflag [#allocation6], %s158
          %s160 = sand.u32 %s69, 1
          %s161 = smul.addr %s160, 2
          %s162 = scalar_lea.vmem [#allocation5], %s161
          %164 = vsyncadd %s159, 0
          %s165 = sadd.s32 %s25, %s24
          %s166 = smul.addr %s165, 2
          %s167 = scalar_lea.hbm %s1, %s166
          %s169 = sshll.u32 %s167, 4
          %s170 = int_to_ptr.hbm [resolvable:$true] %s169
          %s171 = sshll.u32 %s162, 4
          %s172 = int_to_ptr.vmem [resolvable:$true] %s171
          %174 = dma.hbm_to_vmem [thread:$0]  %s170, 32, %s172, %s159
        $region24: #{tpu_custom_call.1} parent=15 // pred_fallthru
          _
      $region16: #{tpu_custom_call.1} parent=5 // pred_fallthru
        _
      %p175 = scmp.le.s32.totalorder 1, %s17
      %p176 = scmp.lt.s32.totalorder %s17, 3
      %p177 = pnand %p175, %p176
      %p178 = pneg %p177
      // Predicated region
      $region25: #{tpu_custom_call.1} parent=5 // pred_check
        _
      $region26: #{tpu_custom_call.1} parent=5 // pred_check_branch
        %180 = sbr.rel (%p177) target = $region28
      $region27: #{tpu_custom_call.1} parent=5 // pred_region
        %s181 = ssub.s32 %s17, 1
        %s182 = sand.u32 %s44, 1
        %s183 = scalar_lea.sflag [#allocation3], %s182
        %s184 = sand.u32 %s44, 1
        %s185 = smul.addr %s184, 8
        %s186 = scalar_lea.vmem [#allocation2], %s185
        // Predicated region
        $region29: #{tpu_custom_call.1} parent=27 // pred_check
          %p187 = pneg %p57
        $region30: #{tpu_custom_call.1} parent=27 // pred_check_branch
          %189 = sbr.rel (%p187) target = $region32
        $region31: #{tpu_custom_call.1} parent=27 // pred_region
          %191 = dma.done %s183, 128
        $region32: #{tpu_custom_call.1} parent=27 // pred_fallthru
          _
        %s192 = sand.u32 %s72, 1
        %s193 = scalar_lea.sflag [#allocation6], %s192
        %s194 = sand.u32 %s72, 1
        %s195 = smul.addr %s194, 2
        %s196 = scalar_lea.vmem [#allocation5], %s195
        // Predicated region
        $region33: #{tpu_custom_call.1} parent=27 // pred_check
          %p197 = pneg %p85
        $region34: #{tpu_custom_call.1} parent=27 // pred_check_branch
          %199 = sbr.rel (%p197) target = $region36
        $region35: #{tpu_custom_call.1} parent=27 // pred_region
          %201 = dma.done %s193, 32
        $region36: #{tpu_custom_call.1} parent=27 // pred_fallthru
          _
        %s202 = sand.u32 %s44, 1
        %s203 = scalar_lea.sflag [#allocation3], %s202
        %s204 = sand.u32 %s44, 1
        %s205 = smul.addr %s204, 8
        %s206 = scalar_lea.vmem [#allocation2], %s205
        %p207 = pneg %p57
        %p208 = pneg %p54
        %s209 = sand.u32 %s72, 1
        %s210 = scalar_lea.sflag [#allocation6], %s209
        %s211 = sand.u32 %s72, 1
        %s212 = smul.addr %s211, 2
        %s213 = scalar_lea.vmem [#allocation5], %s212
        %p214 = pneg %p85
        %p215 = pneg %p82
        %p216 = pneg %p113
        %p217 = pneg %p110
        %s218 = sand.u32 %s100, 1
        %s219 = scalar_lea.sflag [#allocation4], %s218
        %s220 = sand.u32 %s100, 1
        %s221 = smul.addr %s220, 2
        %s222 = scalar_lea.vmem [#allocation7], %s221
        %v223 = vld [vmem:[%s186] sm:$0x3]
        %v224 = vld [vmem:[%s186 + $0x2] sm:$0x3]
        %v225 = vld [vmem:[%s186 + $0x4] sm:$0x3]
        %v226 = vld [vmem:[%s186 + $0x6] sm:$0x3]
        %v227 = vld [vmem:[%s196] sm:$0x3]
        %vm228 = vcmask 1041408
        %v229 = vsel %vm228, %v223, -inf
        %v230 = vsel %vm228, %v224, -inf
        %v231 = vsel %vm228, %v225, -inf
        %v232 = vsel %vm228, %v226, -inf
        %v233 = vmax.f32 %v229, %v230
        %v234 = vmax.f32 %v231, %v232
        %v235 = vmax.f32 %v233, %v234
        %v236 = vsub.f32 %v223, %v235
        %v237 = vsub.f32 %v224, %v235
        %v238 = vsub.f32 %v225, %v235
        %v239 = vsub.f32 %v226, %v235
        %v240 = vmul.f32 %v236, 1.442695
        %v241 = vpow.pop %v240
        %v242 = vmul.f32 %v237, 1.442695
        %v243 = vpow.pop %v242
        %v244 = vmul.f32 %v238, 1.442695
        %v245 = vpow.pop %v244
        %v246 = vmul.f32 %v239, 1.442695
        %v247 = vpow.pop %v246
        %v248 = vsel %vm228, %v241, 0.0
        %v249 = vsel %vm228, %v243, 0.0
        %v250 = vadd.f32 %v248, %v249
        %v251 = vsel %vm228, %v245, 0.0
        %v252 = vadd.f32 %v250, %v251
        %v253 = vsel %vm228, %v247, 0.0
        %v254 = vadd.f32 %v252, %v253
        %vm255 = vcmp.eq.s32.totalorder %v227, 0
        %vm256 = vcmp.eq.s32.totalorder %v227, 1
        %vm257 = vcmp.eq.s32.totalorder %v227, 2
        %vm258 = vcmp.eq.s32.totalorder %v227, 3
        %v259 = vsel %vm255, %v241, 0.0
        %v260 = vsel %vm256, %v243, 0.0
        %v261 = vsel %vm257, %v245, 0.0
        %v262 = vsel %vm258, %v247, 0.0
        %v263 = vsel %vm228, %v259, 0.0
        %v264 = vsel %vm228, %v260, 0.0
        %v265 = vadd.f32 %v263, %v264
        %v266 = vsel %vm228, %v261, 0.0
        %v267 = vadd.f32 %v265, %v266
        %v268 = vsel %vm228, %v262, 0.0
        %v269 = vadd.f32 %v267, %v268
        %v270 = vrcp.pop %v254
        %v271 = vmul.f32 %v254, %v270
        %v272 = vsub.f32 1.0, %v271
        %v273 = vmul.f32 %v270, %v272
        %v274 = vadd.f32 %v270, %v273
        %vm275 = vweird.f32 %v254
        %vm276 = vweird.f32 %v270
        %vm277 = vmor %vm275, %vm276
        %v278 = vsel %vm277, %v270, %v274
        %v279 = vand.u32 2147483647, %v254
        %vm280 = vcmp.eq.f32.partialorder %v279, 8.507059e+37
        %v281 = vand.u32 %v254, 2147483648
        %v282 = vor.u32 1.1754944e-38, %v281
        %v283 = vsel %vm280, %v282, %v278
        %v284 = vmul.f32 %v269, %v283
        %v285 = vsub.f32 1.0, %v284
        %v286 = vmul.f32 %v285, 0.5
        %v287 = vmul.f32 %v286, %v286
        %v288 = vmul.f32 %v287, 0.002186949
        %v289 = vadd.f32 %v288, -0.006746032
        %v290 = vmul.f32 %v287, %v289
        %v291 = vadd.f32 %v290, 0.022222223
        %v292 = vmul.f32 %v287, %v291
        %v293 = vadd.f32 %v292, -0.083333336
        %v294 = vmul.f32 %v287, %v293
        %v295 = vadd.f32 %v294, 0.5
        %v296 = vmul.f32 %v287, %v295
        %297 = vst [vmem:[%s222] sm:$0x3] %v296
        %s298 = sand.u32 %s100, 1
        %s299 = scalar_lea.sflag [#allocation4], %s298
        %s300 = sand.u32 %s100, 1
        %s301 = smul.addr %s300, 2
        %s302 = scalar_lea.vmem [#allocation7], %s301
        // Predicated region
        $region37: #{tpu_custom_call.1} parent=27 // pred_check
          %p303 = pneg %p110
        $region38: #{tpu_custom_call.1} parent=27 // pred_check_branch
          %305 = sbr.rel (%p303) target = $region40
        $region39: #{tpu_custom_call.1} parent=27 // pred_region
          %307 = vsyncadd %s299, 0
          %s308 = sadd.s32 %s27, %s26
          %s309 = smul.addr %s308, 2
          %s310 = scalar_lea.hbm %s2, %s309
          %s312 = sshll.u32 %s302, 4
          %s313 = int_to_ptr.vmem [resolvable:$true] %s312
          %s314 = sshll.u32 %s310, 4
          %s315 = int_to_ptr.hbm [resolvable:$true] %s314
          %317 = dma.vmem_to_hbm [thread:$0]  %s313, 32, %s315, %s299
        $region40: #{tpu_custom_call.1} parent=27 // pred_fallthru
          _
      $region28: #{tpu_custom_call.1} parent=5 // pred_fallthru
        _
      %p318 = scmp.le.s32.totalorder 2, %s17
      // Predicated region
      $region41: #{tpu_custom_call.1} parent=5 // pred_check
        %p319 = pneg %p318
      $region42: #{tpu_custom_call.1} parent=5 // pred_check_branch
        %321 = sbr.rel (%p319) target = $region44
      $region43: #{tpu_custom_call.1} parent=5 // pred_region
        %s322 = ssub.s32 %s17, 2
        // Predicated region
        $region45: #{tpu_custom_call.1} parent=43 // pred_check
          %p323 = pneg %p116
        $region46: #{tpu_custom_call.1} parent=43 // pred_check_branch
          %325 = sbr.rel (%p323) target = $region48
        $region47: #{tpu_custom_call.1} parent=43 // pred_region
          %s326 = sand.u32 %s101, 1
          %s327 = scalar_lea.sflag [#allocation4], %s326
          %s328 = sand.u32 %s101, 1
          %s329 = smul.addr %s328, 2
          %s330 = scalar_lea.vmem [#allocation7], %s329
          %332 = dma.done %s327, 32
        $region48: #{tpu_custom_call.1} parent=43 // pred_fallthru
          _
      $region44: #{tpu_custom_call.1} parent=5 // pred_fallthru
        _
    $region6: #{tpu_custom_call.1} parent=1 // loop_footer
      %s21 = sadd.s32 1, %s17
    $region7: #{tpu_custom_call.1} parent=1 // loop_footer_branch
      %16 = sbr.rel target = $region3
    $region8: #{tpu_custom_call.1} parent=1 // loop_exit
      _
    %333 = vsyncpa [#allocation3], 1
    %s334 = scalar_lea.sflag [#allocation3], 1
    %335 = vsyncpa %s334, 1
    %336 = vsyncpa [#allocation6], 1
    %s337 = scalar_lea.sflag [#allocation6], 1
    %338 = vsyncpa %s337, 1
    %339 = vsyncpa [#allocation4], 1
    %s340 = scalar_lea.sflag [#allocation4], 1
    %341 = vsyncpa %s340, 1

</llo_original>
